<compile_context>
chip_gen: v6e
topology: v6e:2x2x1
jax: 0.10.0
libtpu: 0.0.40
codegen_flags: <defaults>
</compile_context>

<pallas_src>
import jax
import jax.numpy as jnp
from jax.experimental import pallas as pl
from jax.experimental.pallas import tpu as pltpu

# ---- model dims (consistent with the PyTorch module defaults, but seq=8) ----
INPUT_SIZE = 12
HIDDEN_SIZE = 4
OUTPUT_SIZE = 1
SEQ_LEN = 8      # seq_length; layer2 in_features = HIDDEN_SIZE * SEQ_LEN
BATCH = 2


def _make_lstm_kernel(S, I, H, O):
    """Kernel closure over static dims (avoids deriving S from padded shapes)."""
    G = 4 * H
    W = S * G                      # packed param width (= 128 for S=8, H=4)

    def lstm_kernel(x_ref, p_ref, out_ref):
        """Single-invocation kernel (grid=()).

        x_ref   : (B_pad, S*I)   f32  x transposed/reshaped host-side (timesteps
                                      concatenated along lanes per batch row)
        p_ref   : (S*I+1+H+S+1, S*4H) f32 packed params (g-gate cols pre-scaled x2):
                    rows [0, S*I)           -> block-diag W_ih^T   (S*I, S*4H)
                    row   S*I               -> tiled (b_ih+b_hh)   (1,   S*4H)
                    rows [S*I+1, S*I+1+H)   -> W_hh^T in cols<4H   (H,   S*4H)
                    rows [.., ..+S)         -> layer2 rows, cols<H (S,   S*4H)
                    last row                -> b2 in column 0
        out_ref : (B_pad, O)     f32
        """
        B = x_ref.shape[0]

        w_blk = p_ref[0:S * I, :]                         # (S*I, S*4H)
        bias = p_ref[S * I:S * I + 1, :]                  # (1, S*4H)
        r0 = S * I + 1
        whh_t = p_ref[r0:r0 + H, 0:G]                     # (H, 4H)
        r1 = r0 + H
        w2_rows = p_ref[r1:r1 + S, 0:H]                   # (S, H)
        b2v = p_ref[r1 + S:r1 + S + 1, 0:O]               # (1, O)

        # Prologue: ALL timesteps' pre-activations in one MXU pass, lane-dense
        # (B, S*4H) = one (8,128) vreg; bias folded in here (off the chain).
        xw = jnp.dot(x_ref[...], w_blk,
                     preferred_element_type=jnp.float32) + bias

        # Hoisted broadcasts / slices (JAX doesn't CSE these across the unroll;
        # none of them sit on the serial h/c dependency chain).
        whh_b = [jnp.broadcast_to(whh_t[j:j + 1, :], (B, G)) for j in range(H)]
        w2_b = [jnp.broadcast_to(w2_rows[t:t + 1, :], (B, H)) for t in range(S)]
        xw_t = [xw[:, t * G:(t + 1) * G] for t in range(S)]     # static lane slices

        h = jnp.zeros((B, H), jnp.float32)
        c = jnp.zeros((B, H), jnp.float32)
        acc = jnp.zeros((B, H), jnp.float32)

        # S = 8: fully unrolled, every slice below is static.
        for t in range(S):
            # Recurrence h @ W_hh^T as H broadcast-FMAs on the VPU — no tiny MXU
            # matmul on the serial chain.
            hh = h[:, 0:1] * whh_b[0]
            for j in range(1, H):
                hh = hh + h[:, j:j + 1] * whh_b[j]
            gates = xw_t[t] + hh                          # (B, 4H)
            # ONE whole-vreg sigmoid; g-gate tanh recovered via 2*sigmoid(2x)-1
            # (its columns were pre-scaled by 2 when packing p).
            sig = jax.nn.sigmoid(gates)
            i_g = sig[:, 0:H]          # PyTorch gate order: i, f, g, o
            f_g = sig[:, H:2 * H]
            g_g = 2.0 * sig[:, 2 * H:3 * H] - 1.0
            o_g = sig[:, 3 * H:4 * H]
            c = f_g * c + i_g * g_g
            h = o_g * jnp.tanh(c)                         # 2nd (last) EUP launch/step
            # layer2 (O == 1) folded in as an elementwise accumulation; the single
            # lane-reduce after the loop replaces S degenerate (B,H)@(H,1) matmuls.
            acc = acc + h * w2_b[t]

        out_ref[...] = (jnp.sum(acc, axis=1, keepdims=True) + b2v).astype(out_ref.dtype)

    return lstm_kernel


def lstm_forward(x, params):
    """x: (S, B, I) float32 -> (B, O) float32."""
    S, B, I = x.shape
    wih, whh, bih, bhh, w2, b2 = params
    H = whh.shape[1]
    O = w2.shape[0]
    G = 4 * H
    assert w2.shape[1] == S * H, "layer2 in_features must equal hidden*seq"
    assert O == 1, "layer2 folding in-kernel assumes output_size == 1"

    # Pad batch up to a multiple of 8 (f32 sublane count); padded rows are
    # sliced off on return.
    B_pad = max(8, ((B + 7) // 8) * 8)
    if B_pad != B:
        x = jnp.pad(x, ((0, 0), (0, B_pad - B), (0, 0)))
    # (S, B_pad, I) -> (B_pad, S*I): each row = that sequence's timesteps
    # concatenated along lanes, matching the block-diagonal W_ih^T below.
    x_packed = jnp.transpose(x, (1, 0, 2)).reshape(B_pad, S * I).astype(jnp.float32)

    # Pre-scale g-gate columns (2H:3H) by 2 so tanh(g) = 2*sigmoid(2g)-1 costs
    # zero extra EUP launches in-kernel.
    g_scale = jnp.ones((G,), jnp.float32).at[2 * H:3 * H].set(2.0)
    wih_t = jnp.transpose(wih).astype(jnp.float32) * g_scale            # (I, 4H)
    whh_t = jnp.transpose(whh).astype(jnp.float32) * g_scale            # (H, 4H)
    b_row = (bih + bhh).astype(jnp.float32) * g_scale                   # (4H,)

    # Block-diagonal W_ih^T -> one lane-dense MXU pass for all timesteps.
    w_blk = jnp.kron(jnp.eye(S, dtype=jnp.float32), wih_t)              # (S*I, S*4H)
    bias_row = jnp.tile(b_row, S).reshape(1, S * G)                     # (1, S*4H)

    Wd = S * G
    w2_rows = w2.reshape(O, S, H)[0].astype(jnp.float32)                # (S, H)
    whh_pad = jnp.pad(whh_t, ((0, 0), (0, Wd - G)))                     # (H, Wd)
    w2_pad = jnp.pad(w2_rows, ((0, 0), (0, Wd - H)))                    # (S, Wd)
    b2_row = jnp.zeros((1, Wd), jnp.float32).at[0, 0].set(
        b2[0].astype(jnp.float32))                                      # (1, Wd)

    # Pack all parameters into one (S*I+1+H+S+1, S*4H) array -> 2 kernel inputs.
    p = jnp.concatenate([w_blk, bias_row, whh_pad, w2_pad, b2_row], axis=0)

    vmem = pl.BlockSpec(memory_space=pltpu.MemorySpace.VMEM)
    out = pl.pallas_call(
        _make_lstm_kernel(S, I, H, O),
        out_shape=jax.ShapeDtypeStruct((B_pad, O), jnp.float32),
        in_specs=[vmem, vmem],
        out_specs=vmem,
    )(x_packed, p)
    return out[:B]


def ref_forward(x, params):
    """Pure-JAX reference matching PyTorch lstm.forward semantics."""
    wih, whh, bih, bhh, w2, b2 = params
    S, B, I = x.shape
    H = whh.shape[1]
    h = jnp.zeros((B, H), jnp.float32)
    c = jnp.zeros((B, H), jnp.float32)
    outs = []
    for t in range(S):
        gates = x[t] @ wih.T + bih + h @ whh.T + bhh
        i_g = jax.nn.sigmoid(gates[:, 0:H])
        f_g = jax.nn.sigmoid(gates[:, H:2 * H])
        g_g = jnp.tanh(gates[:, 2 * H:3 * H])
        o_g = jax.nn.sigmoid(gates[:, 3 * H:4 * H])
        c = f_g * c + i_g * g_g
        h = o_g * jnp.tanh(c)
        outs.append(h)
    hs = jnp.stack(outs)                                    # (S, B, H)
    feat = jnp.transpose(hs, (1, 0, 2)).reshape(B, S * H)   # x.transpose(0,1).view(b, h*s)
    return feat @ w2.T + b2                                 # (B, O)


def init_params(key, input_size, hidden_size, output_size, seq_len):
    """Deterministic init mimicking PyTorch's U(-1/sqrt(H), 1/sqrt(H))."""
    ks = jax.random.split(key, 6)
    k = 1.0 / jnp.sqrt(hidden_size)
    wih = jax.random.uniform(ks[0], (4 * hidden_size, input_size), jnp.float32, -k, k)
    whh = jax.random.uniform(ks[1], (4 * hidden_size, hidden_size), jnp.float32, -k, k)
    bih = jax.random.uniform(ks[2], (4 * hidden_size,), jnp.float32, -k, k)
    bhh = jax.random.uniform(ks[3], (4 * hidden_size,), jnp.float32, -k, k)
    k2 = 1.0 / jnp.sqrt(hidden_size * seq_len)
    w2 = jax.random.uniform(ks[4], (output_size, hidden_size * seq_len), jnp.float32, -k2, k2)
    b2 = jax.random.uniform(ks[5], (output_size,), jnp.float32, -k2, k2)
    return (wih, whh, bih, bhh, w2, b2)


if __name__ == "__main__":
    key = jax.random.PRNGKey(0)
    pkey, xkey = jax.random.split(key)
    params = init_params(pkey, INPUT_SIZE, HIDDEN_SIZE, OUTPUT_SIZE, SEQ_LEN)
    x = jax.random.normal(xkey, (SEQ_LEN, BATCH, INPUT_SIZE), jnp.float32)

    out = jax.block_until_ready(lstm_forward(x, params))
    ref = jax.block_until_ready(ref_forward(x, params))

    assert out.shape == (BATCH, OUTPUT_SIZE), out.shape
    assert jnp.allclose(out, ref, rtol=1e-3, atol=1e-4), (out, ref)
    print("KERNEL_OK")
</pallas_src>

<mosaic_0001>
module attributes {stable_mosaic.version = 11 : i64} {
  func.func @lstm_kernel(%arg0: memref<8x96xf32, #tpu.memory_space<vmem>>, %arg1: memref<110x128xf32, #tpu.memory_space<vmem>>, %arg2: memref<8x1xf32, #tpu.memory_space<vmem>>) attributes {dimension_semantics = [], scalar_prefetch = 0 : i64, scratch_operands = 0 : i64, tpu.core_type = #tpu.core_type<tc>} {
    %c0 = arith.constant 0 : index
    %c0_0 = arith.constant 0 : index
    %0 = vector.load %arg1[%c0, %c0_0] : memref<110x128xf32, #tpu.memory_space<vmem>>, vector<96x128xf32>
    %c96 = arith.constant 96 : index
    %c0_1 = arith.constant 0 : index
    %1 = vector.load %arg1[%c96, %c0_1] : memref<110x128xf32, #tpu.memory_space<vmem>>, vector<1x128xf32>
    %c97 = arith.constant 97 : index
    %c0_2 = arith.constant 0 : index
    %2 = vector.load %arg1[%c97, %c0_2] : memref<110x128xf32, #tpu.memory_space<vmem>>, vector<4x16xf32>
    %c101 = arith.constant 101 : index
    %c0_3 = arith.constant 0 : index
    %3 = vector.load %arg1[%c101, %c0_3] : memref<110x128xf32, #tpu.memory_space<vmem>>, vector<8x4xf32>
    %c109 = arith.constant 109 : index
    %c0_4 = arith.constant 0 : index
    %4 = vector.load %arg1[%c109, %c0_4] : memref<110x128xf32, #tpu.memory_space<vmem>>, vector<1x1xf32>
    %c0_5 = arith.constant 0 : index
    %c0_6 = arith.constant 0 : index
    %5 = vector.load %arg0[%c0_5, %c0_6] : memref<8x96xf32, #tpu.memory_space<vmem>>, vector<8x96xf32>
    %cst = arith.constant dense<0.000000e+00> : vector<8x128xf32>
    %6 = tpu.matmul %5, %0, %cst {dimension_numbers = #tpu.dot_dimension_numbers<[1], [0], [0], [1], [0, 0, 1, 1], [], []>} : vector<8x96xf32>, vector<96x128xf32>, vector<8x128xf32> -> vector<8x128xf32>
    %7 = vector.broadcast %1 : vector<1x128xf32> to vector<8x128xf32>
    %8 = arith.addf %6, %7 : vector<8x128xf32>
    %9 = vector.extract_strided_slice %2 {offsets = [0, 0], sizes = [1, 16], strides = [1, 1]} : vector<4x16xf32> to vector<1x16xf32>
    %10 = vector.shape_cast %9 : vector<1x16xf32> to vector<1x16xf32>
    %11 = vector.broadcast %10 : vector<1x16xf32> to vector<8x16xf32>
    %12 = vector.extract_strided_slice %2 {offsets = [1, 0], sizes = [1, 16], strides = [1, 1]} : vector<4x16xf32> to vector<1x16xf32>
    %13 = vector.shape_cast %12 : vector<1x16xf32> to vector<1x16xf32>
    %14 = vector.broadcast %13 : vector<1x16xf32> to vector<8x16xf32>
    %15 = vector.extract_strided_slice %2 {offsets = [2, 0], sizes = [1, 16], strides = [1, 1]} : vector<4x16xf32> to vector<1x16xf32>
    %16 = vector.shape_cast %15 : vector<1x16xf32> to vector<1x16xf32>
    %17 = vector.broadcast %16 : vector<1x16xf32> to vector<8x16xf32>
    %18 = vector.extract_strided_slice %2 {offsets = [3, 0], sizes = [1, 16], strides = [1, 1]} : vector<4x16xf32> to vector<1x16xf32>
    %19 = vector.shape_cast %18 : vector<1x16xf32> to vector<1x16xf32>
    %20 = vector.broadcast %19 : vector<1x16xf32> to vector<8x16xf32>
    %21 = vector.extract_strided_slice %3 {offsets = [0, 0], sizes = [1, 4], strides = [1, 1]} : vector<8x4xf32> to vector<1x4xf32>
    %22 = vector.shape_cast %21 : vector<1x4xf32> to vector<1x4xf32>
    %23 = vector.broadcast %22 : vector<1x4xf32> to vector<8x4xf32>
    %24 = vector.extract_strided_slice %3 {offsets = [1, 0], sizes = [1, 4], strides = [1, 1]} : vector<8x4xf32> to vector<1x4xf32>
    %25 = vector.shape_cast %24 : vector<1x4xf32> to vector<1x4xf32>
    %26 = vector.broadcast %25 : vector<1x4xf32> to vector<8x4xf32>
    %27 = vector.extract_strided_slice %3 {offsets = [2, 0], sizes = [1, 4], strides = [1, 1]} : vector<8x4xf32> to vector<1x4xf32>
    %28 = vector.shape_cast %27 : vector<1x4xf32> to vector<1x4xf32>
    %29 = vector.broadcast %28 : vector<1x4xf32> to vector<8x4xf32>
    %30 = vector.extract_strided_slice %3 {offsets = [3, 0], sizes = [1, 4], strides = [1, 1]} : vector<8x4xf32> to vector<1x4xf32>
    %31 = vector.shape_cast %30 : vector<1x4xf32> to vector<1x4xf32>
    %32 = vector.broadcast %31 : vector<1x4xf32> to vector<8x4xf32>
    %33 = vector.extract_strided_slice %3 {offsets = [4, 0], sizes = [1, 4], strides = [1, 1]} : vector<8x4xf32> to vector<1x4xf32>
    %34 = vector.shape_cast %33 : vector<1x4xf32> to vector<1x4xf32>
    %35 = vector.broadcast %34 : vector<1x4xf32> to vector<8x4xf32>
    %36 = vector.extract_strided_slice %3 {offsets = [5, 0], sizes = [1, 4], strides = [1, 1]} : vector<8x4xf32> to vector<1x4xf32>
    %37 = vector.shape_cast %36 : vector<1x4xf32> to vector<1x4xf32>
    %38 = vector.broadcast %37 : vector<1x4xf32> to vector<8x4xf32>
    %39 = vector.extract_strided_slice %3 {offsets = [6, 0], sizes = [1, 4], strides = [1, 1]} : vector<8x4xf32> to vector<1x4xf32>
    %40 = vector.shape_cast %39 : vector<1x4xf32> to vector<1x4xf32>
    %41 = vector.broadcast %40 : vector<1x4xf32> to vector<8x4xf32>
    %42 = vector.extract_strided_slice %3 {offsets = [7, 0], sizes = [1, 4], strides = [1, 1]} : vector<8x4xf32> to vector<1x4xf32>
    %43 = vector.shape_cast %42 : vector<1x4xf32> to vector<1x4xf32>
    %44 = vector.broadcast %43 : vector<1x4xf32> to vector<8x4xf32>
    %45 = vector.extract_strided_slice %8 {offsets = [0, 0], sizes = [8, 16], strides = [1, 1]} : vector<8x128xf32> to vector<8x16xf32>
    %46 = vector.extract_strided_slice %8 {offsets = [0, 16], sizes = [8, 16], strides = [1, 1]} : vector<8x128xf32> to vector<8x16xf32>
    %47 = vector.extract_strided_slice %8 {offsets = [0, 32], sizes = [8, 16], strides = [1, 1]} : vector<8x128xf32> to vector<8x16xf32>
    %48 = vector.extract_strided_slice %8 {offsets = [0, 48], sizes = [8, 16], strides = [1, 1]} : vector<8x128xf32> to vector<8x16xf32>
    %49 = vector.extract_strided_slice %8 {offsets = [0, 64], sizes = [8, 16], strides = [1, 1]} : vector<8x128xf32> to vector<8x16xf32>
    %50 = vector.extract_strided_slice %8 {offsets = [0, 80], sizes = [8, 16], strides = [1, 1]} : vector<8x128xf32> to vector<8x16xf32>
    %51 = vector.extract_strided_slice %8 {offsets = [0, 96], sizes = [8, 16], strides = [1, 1]} : vector<8x128xf32> to vector<8x16xf32>
    %52 = vector.extract_strided_slice %8 {offsets = [0, 112], sizes = [8, 16], strides = [1, 1]} : vector<8x128xf32> to vector<8x16xf32>
    %cst_7 = arith.constant 0.000000e+00 : f32
    %53 = vector.broadcast %cst_7 : f32 to vector<8x4xf32>
    %cst_8 = arith.constant 0.000000e+00 : f32
    %54 = vector.broadcast %cst_8 : f32 to vector<8x4xf32>
    %cst_9 = arith.constant 0.000000e+00 : f32
    %55 = vector.broadcast %cst_9 : f32 to vector<8x4xf32>
    %56 = vector.extract_strided_slice %53 {offsets = [0, 0], sizes = [8, 1], strides = [1, 1]} : vector<8x4xf32> to vector<8x1xf32>
    %57 = vector.broadcast %56 : vector<8x1xf32> to vector<8x16xf32>
    %58 = arith.mulf %57, %11 : vector<8x16xf32>
    %59 = vector.extract_strided_slice %53 {offsets = [0, 1], sizes = [8, 1], strides = [1, 1]} : vector<8x4xf32> to vector<8x1xf32>
    %60 = vector.broadcast %59 : vector<8x1xf32> to vector<8x16xf32>
    %61 = arith.mulf %60, %14 : vector<8x16xf32>
    %62 = arith.addf %58, %61 : vector<8x16xf32>
    %63 = vector.extract_strided_slice %53 {offsets = [0, 2], sizes = [8, 1], strides = [1, 1]} : vector<8x4xf32> to vector<8x1xf32>
    %64 = vector.broadcast %63 : vector<8x1xf32> to vector<8x16xf32>
    %65 = arith.mulf %64, %17 : vector<8x16xf32>
    %66 = arith.addf %62, %65 : vector<8x16xf32>
    %67 = vector.extract_strided_slice %53 {offsets = [0, 3], sizes = [8, 1], strides = [1, 1]} : vector<8x4xf32> to vector<8x1xf32>
    %68 = vector.broadcast %67 : vector<8x1xf32> to vector<8x16xf32>
    %69 = arith.mulf %68, %20 : vector<8x16xf32>
    %70 = arith.addf %66, %69 : vector<8x16xf32>
    %71 = arith.addf %45, %70 : vector<8x16xf32>
    %72 = arith.negf %71 : vector<8x16xf32>
    %73 = math.exp %72 : vector<8x16xf32>
    %cst_10 = arith.constant 1.000000e+00 : f32
    %74 = vector.broadcast %cst_10 : f32 to vector<8x16xf32>
    %75 = arith.addf %74, %73 : vector<8x16xf32>
    %76 = arith.divf %74, %75 : vector<8x16xf32>
    %77 = vector.extract_strided_slice %76 {offsets = [0, 0], sizes = [8, 4], strides = [1, 1]} : vector<8x16xf32> to vector<8x4xf32>
    %78 = vector.extract_strided_slice %76 {offsets = [0, 4], sizes = [8, 4], strides = [1, 1]} : vector<8x16xf32> to vector<8x4xf32>
    %79 = vector.extract_strided_slice %76 {offsets = [0, 8], sizes = [8, 4], strides = [1, 1]} : vector<8x16xf32> to vector<8x4xf32>
    %cst_11 = arith.constant 2.000000e+00 : f32
    %80 = vector.broadcast %cst_11 : f32 to vector<8x4xf32>
    %81 = arith.mulf %80, %79 : vector<8x4xf32>
    %cst_12 = arith.constant 1.000000e+00 : f32
    %82 = vector.broadcast %cst_12 : f32 to vector<8x4xf32>
    %83 = arith.subf %81, %82 : vector<8x4xf32>
    %84 = vector.extract_strided_slice %76 {offsets = [0, 12], sizes = [8, 4], strides = [1, 1]} : vector<8x16xf32> to vector<8x4xf32>
    %85 = arith.mulf %78, %54 : vector<8x4xf32>
    %86 = arith.mulf %77, %83 : vector<8x4xf32>
    %87 = arith.addf %85, %86 : vector<8x4xf32>
    %88 = math.tanh %87 : vector<8x4xf32>
    %89 = arith.mulf %84, %88 : vector<8x4xf32>
    %90 = arith.mulf %89, %23 : vector<8x4xf32>
    %91 = arith.addf %55, %90 : vector<8x4xf32>
    %92 = vector.extract_strided_slice %89 {offsets = [0, 0], sizes = [8, 1], strides = [1, 1]} : vector<8x4xf32> to vector<8x1xf32>
    %93 = vector.broadcast %92 : vector<8x1xf32> to vector<8x16xf32>
    %94 = arith.mulf %93, %11 : vector<8x16xf32>
    %95 = vector.extract_strided_slice %89 {offsets = [0, 1], sizes = [8, 1], strides = [1, 1]} : vector<8x4xf32> to vector<8x1xf32>
    %96 = vector.broadcast %95 : vector<8x1xf32> to vector<8x16xf32>
    %97 = arith.mulf %96, %14 : vector<8x16xf32>
    %98 = arith.addf %94, %97 : vector<8x16xf32>
    %99 = vector.extract_strided_slice %89 {offsets = [0, 2], sizes = [8, 1], strides = [1, 1]} : vector<8x4xf32> to vector<8x1xf32>
    %100 = vector.broadcast %99 : vector<8x1xf32> to vector<8x16xf32>
    %101 = arith.mulf %100, %17 : vector<8x16xf32>
    %102 = arith.addf %98, %101 : vector<8x16xf32>
    %103 = vector.extract_strided_slice %89 {offsets = [0, 3], sizes = [8, 1], strides = [1, 1]} : vector<8x4xf32> to vector<8x1xf32>
    %104 = vector.broadcast %103 : vector<8x1xf32> to vector<8x16xf32>
    %105 = arith.mulf %104, %20 : vector<8x16xf32>
    %106 = arith.addf %102, %105 : vector<8x16xf32>
    %107 = arith.addf %46, %106 : vector<8x16xf32>
    %108 = arith.negf %107 : vector<8x16xf32>
    %109 = math.exp %108 : vector<8x16xf32>
    %cst_13 = arith.constant 1.000000e+00 : f32
    %110 = vector.broadcast %cst_13 : f32 to vector<8x16xf32>
    %111 = arith.addf %110, %109 : vector<8x16xf32>
    %112 = arith.divf %110, %111 : vector<8x16xf32>
    %113 = vector.extract_strided_slice %112 {offsets = [0, 0], sizes = [8, 4], strides = [1, 1]} : vector<8x16xf32> to vector<8x4xf32>
    %114 = vector.extract_strided_slice %112 {offsets = [0, 4], sizes = [8, 4], strides = [1, 1]} : vector<8x16xf32> to vector<8x4xf32>
    %115 = vector.extract_strided_slice %112 {offsets = [0, 8], sizes = [8, 4], strides = [1, 1]} : vector<8x16xf32> to vector<8x4xf32>
    %cst_14 = arith.constant 2.000000e+00 : f32
    %116 = vector.broadcast %cst_14 : f32 to vector<8x4xf32>
    %117 = arith.mulf %116, %115 : vector<8x4xf32>
    %cst_15 = arith.constant 1.000000e+00 : f32
    %118 = vector.broadcast %cst_15 : f32 to vector<8x4xf32>
    %119 = arith.subf %117, %118 : vector<8x4xf32>
    %120 = vector.extract_strided_slice %112 {offsets = [0, 12], sizes = [8, 4], strides = [1, 1]} : vector<8x16xf32> to vector<8x4xf32>
    %121 = arith.mulf %114, %87 : vector<8x4xf32>
    %122 = arith.mulf %113, %119 : vector<8x4xf32>
    %123 = arith.addf %121, %122 : vector<8x4xf32>
    %124 = math.tanh %123 : vector<8x4xf32>
    %125 = arith.mulf %120, %124 : vector<8x4xf32>
    %126 = arith.mulf %125, %26 : vector<8x4xf32>
    %127 = arith.addf %91, %126 : vector<8x4xf32>
    %128 = vector.extract_strided_slice %125 {offsets = [0, 0], sizes = [8, 1], strides = [1, 1]} : vector<8x4xf32> to vector<8x1xf32>
    %129 = vector.broadcast %128 : vector<8x1xf32> to vector<8x16xf32>
    %130 = arith.mulf %129, %11 : vector<8x16xf32>
    %131 = vector.extract_strided_slice %125 {offsets = [0, 1], sizes = [8, 1], strides = [1, 1]} : vector<8x4xf32> to vector<8x1xf32>
    %132 = vector.broadcast %131 : vector<8x1xf32> to vector<8x16xf32>
    %133 = arith.mulf %132, %14 : vector<8x16xf32>
    %134 = arith.addf %130, %133 : vector<8x16xf32>
    %135 = vector.extract_strided_slice %125 {offsets = [0, 2], sizes = [8, 1], strides = [1, 1]} : vector<8x4xf32> to vector<8x1xf32>
    %136 = vector.broadcast %135 : vector<8x1xf32> to vector<8x16xf32>
    %137 = arith.mulf %136, %17 : vector<8x16xf32>
    %138 = arith.addf %134, %137 : vector<8x16xf32>
    %139 = vector.extract_strided_slice %125 {offsets = [0, 3], sizes = [8, 1], strides = [1, 1]} : vector<8x4xf32> to vector<8x1xf32>
    %140 = vector.broadcast %139 : vector<8x1xf32> to vector<8x16xf32>
    %141 = arith.mulf %140, %20 : vector<8x16xf32>
    %142 = arith.addf %138, %141 : vector<8x16xf32>
    %143 = arith.addf %47, %142 : vector<8x16xf32>
    %144 = arith.negf %143 : vector<8x16xf32>
    %145 = math.exp %144 : vector<8x16xf32>
    %cst_16 = arith.constant 1.000000e+00 : f32
    %146 = vector.broadcast %cst_16 : f32 to vector<8x16xf32>
    %147 = arith.addf %146, %145 : vector<8x16xf32>
    %148 = arith.divf %146, %147 : vector<8x16xf32>
    %149 = vector.extract_strided_slice %148 {offsets = [0, 0], sizes = [8, 4], strides = [1, 1]} : vector<8x16xf32> to vector<8x4xf32>
    %150 = vector.extract_strided_slice %148 {offsets = [0, 4], sizes = [8, 4], strides = [1, 1]} : vector<8x16xf32> to vector<8x4xf32>
    %151 = vector.extract_strided_slice %148 {offsets = [0, 8], sizes = [8, 4], strides = [1, 1]} : vector<8x16xf32> to vector<8x4xf32>
    %cst_17 = arith.constant 2.000000e+00 : f32
    %152 = vector.broadcast %cst_17 : f32 to vector<8x4xf32>
    %153 = arith.mulf %152, %151 : vector<8x4xf32>
    %cst_18 = arith.constant 1.000000e+00 : f32
    %154 = vector.broadcast %cst_18 : f32 to vector<8x4xf32>
    %155 = arith.subf %153, %154 : vector<8x4xf32>
    %156 = vector.extract_strided_slice %148 {offsets = [0, 12], sizes = [8, 4], strides = [1, 1]} : vector<8x16xf32> to vector<8x4xf32>
    %157 = arith.mulf %150, %123 : vector<8x4xf32>
    %158 = arith.mulf %149, %155 : vector<8x4xf32>
    %159 = arith.addf %157, %158 : vector<8x4xf32>
    %160 = math.tanh %159 : vector<8x4xf32>
    %161 = arith.mulf %156, %160 : vector<8x4xf32>
    %162 = arith.mulf %161, %29 : vector<8x4xf32>
    %163 = arith.addf %127, %162 : vector<8x4xf32>
    %164 = vector.extract_strided_slice %161 {offsets = [0, 0], sizes = [8, 1], strides = [1, 1]} : vector<8x4xf32> to vector<8x1xf32>
    %165 = vector.broadcast %164 : vector<8x1xf32> to vector<8x16xf32>
    %166 = arith.mulf %165, %11 : vector<8x16xf32>
    %167 = vector.extract_strided_slice %161 {offsets = [0, 1], sizes = [8, 1], strides = [1, 1]} : vector<8x4xf32> to vector<8x1xf32>
    %168 = vector.broadcast %167 : vector<8x1xf32> to vector<8x16xf32>
    %169 = arith.mulf %168, %14 : vector<8x16xf32>
    %170 = arith.addf %166, %169 : vector<8x16xf32>
    %171 = vector.extract_strided_slice %161 {offsets = [0, 2], sizes = [8, 1], strides = [1, 1]} : vector<8x4xf32> to vector<8x1xf32>
    %172 = vector.broadcast %171 : vector<8x1xf32> to vector<8x16xf32>
    %173 = arith.mulf %172, %17 : vector<8x16xf32>
    %174 = arith.addf %170, %173 : vector<8x16xf32>
    %175 = vector.extract_strided_slice %161 {offsets = [0, 3], sizes = [8, 1], strides = [1, 1]} : vector<8x4xf32> to vector<8x1xf32>
    %176 = vector.broadcast %175 : vector<8x1xf32> to vector<8x16xf32>
    %177 = arith.mulf %176, %20 : vector<8x16xf32>
    %178 = arith.addf %174, %177 : vector<8x16xf32>
    %179 = arith.addf %48, %178 : vector<8x16xf32>
    %180 = arith.negf %179 : vector<8x16xf32>
    %181 = math.exp %180 : vector<8x16xf32>
    %cst_19 = arith.constant 1.000000e+00 : f32
    %182 = vector.broadcast %cst_19 : f32 to vector<8x16xf32>
    %183 = arith.addf %182, %181 : vector<8x16xf32>
    %184 = arith.divf %182, %183 : vector<8x16xf32>
    %185 = vector.extract_strided_slice %184 {offsets = [0, 0], sizes = [8, 4], strides = [1, 1]} : vector<8x16xf32> to vector<8x4xf32>
    %186 = vector.extract_strided_slice %184 {offsets = [0, 4], sizes = [8, 4], strides = [1, 1]} : vector<8x16xf32> to vector<8x4xf32>
    %187 = vector.extract_strided_slice %184 {offsets = [0, 8], sizes = [8, 4], strides = [1, 1]} : vector<8x16xf32> to vector<8x4xf32>
    %cst_20 = arith.constant 2.000000e+00 : f32
    %188 = vector.broadcast %cst_20 : f32 to vector<8x4xf32>
    %189 = arith.mulf %188, %187 : vector<8x4xf32>
    %cst_21 = arith.constant 1.000000e+00 : f32
    %190 = vector.broadcast %cst_21 : f32 to vector<8x4xf32>
    %191 = arith.subf %189, %190 : vector<8x4xf32>
    %192 = vector.extract_strided_slice %184 {offsets = [0, 12], sizes = [8, 4], strides = [1, 1]} : vector<8x16xf32> to vector<8x4xf32>
    %193 = arith.mulf %186, %159 : vector<8x4xf32>
    %194 = arith.mulf %185, %191 : vector<8x4xf32>
    %195 = arith.addf %193, %194 : vector<8x4xf32>
    %196 = math.tanh %195 : vector<8x4xf32>
    %197 = arith.mulf %192, %196 : vector<8x4xf32>
    %198 = arith.mulf %197, %32 : vector<8x4xf32>
    %199 = arith.addf %163, %198 : vector<8x4xf32>
    %200 = vector.extract_strided_slice %197 {offsets = [0, 0], sizes = [8, 1], strides = [1, 1]} : vector<8x4xf32> to vector<8x1xf32>
    %201 = vector.broadcast %200 : vector<8x1xf32> to vector<8x16xf32>
    %202 = arith.mulf %201, %11 : vector<8x16xf32>
    %203 = vector.extract_strided_slice %197 {offsets = [0, 1], sizes = [8, 1], strides = [1, 1]} : vector<8x4xf32> to vector<8x1xf32>
    %204 = vector.broadcast %203 : vector<8x1xf32> to vector<8x16xf32>
    %205 = arith.mulf %204, %14 : vector<8x16xf32>
    %206 = arith.addf %202, %205 : vector<8x16xf32>
    %207 = vector.extract_strided_slice %197 {offsets = [0, 2], sizes = [8, 1], strides = [1, 1]} : vector<8x4xf32> to vector<8x1xf32>
    %208 = vector.broadcast %207 : vector<8x1xf32> to vector<8x16xf32>
    %209 = arith.mulf %208, %17 : vector<8x16xf32>
    %210 = arith.addf %206, %209 : vector<8x16xf32>
    %211 = vector.extract_strided_slice %197 {offsets = [0, 3], sizes = [8, 1], strides = [1, 1]} : vector<8x4xf32> to vector<8x1xf32>
    %212 = vector.broadcast %211 : vector<8x1xf32> to vector<8x16xf32>
    %213 = arith.mulf %212, %20 : vector<8x16xf32>
    %214 = arith.addf %210, %213 : vector<8x16xf32>
    %215 = arith.addf %49, %214 : vector<8x16xf32>
    %216 = arith.negf %215 : vector<8x16xf32>
    %217 = math.exp %216 : vector<8x16xf32>
    %cst_22 = arith.constant 1.000000e+00 : f32
    %218 = vector.broadcast %cst_22 : f32 to vector<8x16xf32>
    %219 = arith.addf %218, %217 : vector<8x16xf32>
    %220 = arith.divf %218, %219 : vector<8x16xf32>
    %221 = vector.extract_strided_slice %220 {offsets = [0, 0], sizes = [8, 4], strides = [1, 1]} : vector<8x16xf32> to vector<8x4xf32>
    %222 = vector.extract_strided_slice %220 {offsets = [0, 4], sizes = [8, 4], strides = [1, 1]} : vector<8x16xf32> to vector<8x4xf32>
    %223 = vector.extract_strided_slice %220 {offsets = [0, 8], sizes = [8, 4], strides = [1, 1]} : vector<8x16xf32> to vector<8x4xf32>
    %cst_23 = arith.constant 2.000000e+00 : f32
    %224 = vector.broadcast %cst_23 : f32 to vector<8x4xf32>
    %225 = arith.mulf %224, %223 : vector<8x4xf32>
    %cst_24 = arith.constant 1.000000e+00 : f32
    %226 = vector.broadcast %cst_24 : f32 to vector<8x4xf32>
    %227 = arith.subf %225, %226 : vector<8x4xf32>
    %228 = vector.extract_strided_slice %220 {offsets = [0, 12], sizes = [8, 4], strides = [1, 1]} : vector<8x16xf32> to vector<8x4xf32>
    %229 = arith.mulf %222, %195 : vector<8x4xf32>
    %230 = arith.mulf %221, %227 : vector<8x4xf32>
    %231 = arith.addf %229, %230 : vector<8x4xf32>
    %232 = math.tanh %231 : vector<8x4xf32>
    %233 = arith.mulf %228, %232 : vector<8x4xf32>
    %234 = arith.mulf %233, %35 : vector<8x4xf32>
    %235 = arith.addf %199, %234 : vector<8x4xf32>
    %236 = vector.extract_strided_slice %233 {offsets = [0, 0], sizes = [8, 1], strides = [1, 1]} : vector<8x4xf32> to vector<8x1xf32>
    %237 = vector.broadcast %236 : vector<8x1xf32> to vector<8x16xf32>
    %238 = arith.mulf %237, %11 : vector<8x16xf32>
    %239 = vector.extract_strided_slice %233 {offsets = [0, 1], sizes = [8, 1], strides = [1, 1]} : vector<8x4xf32> to vector<8x1xf32>
    %240 = vector.broadcast %239 : vector<8x1xf32> to vector<8x16xf32>
    %241 = arith.mulf %240, %14 : vector<8x16xf32>
    %242 = arith.addf %238, %241 : vector<8x16xf32>
    %243 = vector.extract_strided_slice %233 {offsets = [0, 2], sizes = [8, 1], strides = [1, 1]} : vector<8x4xf32> to vector<8x1xf32>
    %244 = vector.broadcast %243 : vector<8x1xf32> to vector<8x16xf32>
    %245 = arith.mulf %244, %17 : vector<8x16xf32>
    %246 = arith.addf %242, %245 : vector<8x16xf32>
    %247 = vector.extract_strided_slice %233 {offsets = [0, 3], sizes = [8, 1], strides = [1, 1]} : vector<8x4xf32> to vector<8x1xf32>
    %248 = vector.broadcast %247 : vector<8x1xf32> to vector<8x16xf32>
    %249 = arith.mulf %248, %20 : vector<8x16xf32>
    %250 = arith.addf %246, %249 : vector<8x16xf32>
    %251 = arith.addf %50, %250 : vector<8x16xf32>
    %252 = arith.negf %251 : vector<8x16xf32>
    %253 = math.exp %252 : vector<8x16xf32>
    %cst_25 = arith.constant 1.000000e+00 : f32
    %254 = vector.broadcast %cst_25 : f32 to vector<8x16xf32>
    %255 = arith.addf %254, %253 : vector<8x16xf32>
    %256 = arith.divf %254, %255 : vector<8x16xf32>
    %257 = vector.extract_strided_slice %256 {offsets = [0, 0], sizes = [8, 4], strides = [1, 1]} : vector<8x16xf32> to vector<8x4xf32>
    %258 = vector.extract_strided_slice %256 {offsets = [0, 4], sizes = [8, 4], strides = [1, 1]} : vector<8x16xf32> to vector<8x4xf32>
    %259 = vector.extract_strided_slice %256 {offsets = [0, 8], sizes = [8, 4], strides = [1, 1]} : vector<8x16xf32> to vector<8x4xf32>
    %cst_26 = arith.constant 2.000000e+00 : f32
    %260 = vector.broadcast %cst_26 : f32 to vector<8x4xf32>
    %261 = arith.mulf %260, %259 : vector<8x4xf32>
    %cst_27 = arith.constant 1.000000e+00 : f32
    %262 = vector.broadcast %cst_27 : f32 to vector<8x4xf32>
    %263 = arith.subf %261, %262 : vector<8x4xf32>
    %264 = vector.extract_strided_slice %256 {offsets = [0, 12], sizes = [8, 4], strides = [1, 1]} : vector<8x16xf32> to vector<8x4xf32>
    %265 = arith.mulf %258, %231 : vector<8x4xf32>
    %266 = arith.mulf %257, %263 : vector<8x4xf32>
    %267 = arith.addf %265, %266 : vector<8x4xf32>
    %268 = math.tanh %267 : vector<8x4xf32>
    %269 = arith.mulf %264, %268 : vector<8x4xf32>
    %270 = arith.mulf %269, %38 : vector<8x4xf32>
    %271 = arith.addf %235, %270 : vector<8x4xf32>
    %272 = vector.extract_strided_slice %269 {offsets = [0, 0], sizes = [8, 1], strides = [1, 1]} : vector<8x4xf32> to vector<8x1xf32>
    %273 = vector.broadcast %272 : vector<8x1xf32> to vector<8x16xf32>
    %274 = arith.mulf %273, %11 : vector<8x16xf32>
    %275 = vector.extract_strided_slice %269 {offsets = [0, 1], sizes = [8, 1], strides = [1, 1]} : vector<8x4xf32> to vector<8x1xf32>
    %276 = vector.broadcast %275 : vector<8x1xf32> to vector<8x16xf32>
    %277 = arith.mulf %276, %14 : vector<8x16xf32>
    %278 = arith.addf %274, %277 : vector<8x16xf32>
    %279 = vector.extract_strided_slice %269 {offsets = [0, 2], sizes = [8, 1], strides = [1, 1]} : vector<8x4xf32> to vector<8x1xf32>
    %280 = vector.broadcast %279 : vector<8x1xf32> to vector<8x16xf32>
    %281 = arith.mulf %280, %17 : vector<8x16xf32>
    %282 = arith.addf %278, %281 : vector<8x16xf32>
    %283 = vector.extract_strided_slice %269 {offsets = [0, 3], sizes = [8, 1], strides = [1, 1]} : vector<8x4xf32> to vector<8x1xf32>
    %284 = vector.broadcast %283 : vector<8x1xf32> to vector<8x16xf32>
    %285 = arith.mulf %284, %20 : vector<8x16xf32>
    %286 = arith.addf %282, %285 : vector<8x16xf32>
    %287 = arith.addf %51, %286 : vector<8x16xf32>
    %288 = arith.negf %287 : vector<8x16xf32>
    %289 = math.exp %288 : vector<8x16xf32>
    %cst_28 = arith.constant 1.000000e+00 : f32
    %290 = vector.broadcast %cst_28 : f32 to vector<8x16xf32>
    %291 = arith.addf %290, %289 : vector<8x16xf32>
    %292 = arith.divf %290, %291 : vector<8x16xf32>
    %293 = vector.extract_strided_slice %292 {offsets = [0, 0], sizes = [8, 4], strides = [1, 1]} : vector<8x16xf32> to vector<8x4xf32>
    %294 = vector.extract_strided_slice %292 {offsets = [0, 4], sizes = [8, 4], strides = [1, 1]} : vector<8x16xf32> to vector<8x4xf32>
    %295 = vector.extract_strided_slice %292 {offsets = [0, 8], sizes = [8, 4], strides = [1, 1]} : vector<8x16xf32> to vector<8x4xf32>
    %cst_29 = arith.constant 2.000000e+00 : f32
    %296 = vector.broadcast %cst_29 : f32 to vector<8x4xf32>
    %297 = arith.mulf %296, %295 : vector<8x4xf32>
    %cst_30 = arith.constant 1.000000e+00 : f32
    %298 = vector.broadcast %cst_30 : f32 to vector<8x4xf32>
    %299 = arith.subf %297, %298 : vector<8x4xf32>
    %300 = vector.extract_strided_slice %292 {offsets = [0, 12], sizes = [8, 4], strides = [1, 1]} : vector<8x16xf32> to vector<8x4xf32>
    %301 = arith.mulf %294, %267 : vector<8x4xf32>
    %302 = arith.mulf %293, %299 : vector<8x4xf32>
    %303 = arith.addf %301, %302 : vector<8x4xf32>
    %304 = math.tanh %303 : vector<8x4xf32>
    %305 = arith.mulf %300, %304 : vector<8x4xf32>
    %306 = arith.mulf %305, %41 : vector<8x4xf32>
    %307 = arith.addf %271, %306 : vector<8x4xf32>
    %308 = vector.extract_strided_slice %305 {offsets = [0, 0], sizes = [8, 1], strides = [1, 1]} : vector<8x4xf32> to vector<8x1xf32>
    %309 = vector.broadcast %308 : vector<8x1xf32> to vector<8x16xf32>
    %310 = arith.mulf %309, %11 : vector<8x16xf32>
    %311 = vector.extract_strided_slice %305 {offsets = [0, 1], sizes = [8, 1], strides = [1, 1]} : vector<8x4xf32> to vector<8x1xf32>
    %312 = vector.broadcast %311 : vector<8x1xf32> to vector<8x16xf32>
    %313 = arith.mulf %312, %14 : vector<8x16xf32>
    %314 = arith.addf %310, %313 : vector<8x16xf32>
    %315 = vector.extract_strided_slice %305 {offsets = [0, 2], sizes = [8, 1], strides = [1, 1]} : vector<8x4xf32> to vector<8x1xf32>
    %316 = vector.broadcast %315 : vector<8x1xf32> to vector<8x16xf32>
    %317 = arith.mulf %316, %17 : vector<8x16xf32>
    %318 = arith.addf %314, %317 : vector<8x16xf32>
    %319 = vector.extract_strided_slice %305 {offsets = [0, 3], sizes = [8, 1], strides = [1, 1]} : vector<8x4xf32> to vector<8x1xf32>
    %320 = vector.broadcast %319 : vector<8x1xf32> to vector<8x16xf32>
    %321 = arith.mulf %320, %20 : vector<8x16xf32>
    %322 = arith.addf %318, %321 : vector<8x16xf32>
    %323 = arith.addf %52, %322 : vector<8x16xf32>
    %324 = arith.negf %323 : vector<8x16xf32>
    %325 = math.exp %324 : vector<8x16xf32>
    %cst_31 = arith.constant 1.000000e+00 : f32
    %326 = vector.broadcast %cst_31 : f32 to vector<8x16xf32>
    %327 = arith.addf %326, %325 : vector<8x16xf32>
    %328 = arith.divf %326, %327 : vector<8x16xf32>
    %329 = vector.extract_strided_slice %328 {offsets = [0, 0], sizes = [8, 4], strides = [1, 1]} : vector<8x16xf32> to vector<8x4xf32>
    %330 = vector.extract_strided_slice %328 {offsets = [0, 4], sizes = [8, 4], strides = [1, 1]} : vector<8x16xf32> to vector<8x4xf32>
    %331 = vector.extract_strided_slice %328 {offsets = [0, 8], sizes = [8, 4], strides = [1, 1]} : vector<8x16xf32> to vector<8x4xf32>
    %cst_32 = arith.constant 2.000000e+00 : f32
    %332 = vector.broadcast %cst_32 : f32 to vector<8x4xf32>
    %333 = arith.mulf %332, %331 : vector<8x4xf32>
    %cst_33 = arith.constant 1.000000e+00 : f32
    %334 = vector.broadcast %cst_33 : f32 to vector<8x4xf32>
    %335 = arith.subf %333, %334 : vector<8x4xf32>
    %336 = vector.extract_strided_slice %328 {offsets = [0, 12], sizes = [8, 4], strides = [1, 1]} : vector<8x16xf32> to vector<8x4xf32>
    %337 = arith.mulf %330, %303 : vector<8x4xf32>
    %338 = arith.mulf %329, %335 : vector<8x4xf32>
    %339 = arith.addf %337, %338 : vector<8x4xf32>
    %340 = math.tanh %339 : vector<8x4xf32>
    %341 = arith.mulf %336, %340 : vector<8x4xf32>
    %342 = arith.mulf %341, %44 : vector<8x4xf32>
    %343 = arith.addf %307, %342 : vector<8x4xf32>
    %cst_34 = arith.constant dense<0.000000e+00> : vector<8xf32>
    %344 = vector.multi_reduction <add>, %343, %cst_34 [1] : vector<8x4xf32> to vector<8xf32>
    %345 = vector.shape_cast %344 : vector<8xf32> to vector<8x1xf32>
    %346 = vector.broadcast %4 : vector<1x1xf32> to vector<8x1xf32>
    %347 = arith.addf %345, %346 : vector<8x1xf32>
    %c0_35 = arith.constant 0 : index
    %c0_36 = arith.constant 0 : index
    %348 = vector.load %arg2[%c0_35, %c0_36] : memref<8x1xf32, #tpu.memory_space<vmem>>, vector<8x1xf32>
    tpu.vector_store %arg2[%c0_35, %c0_36], %347 {strides = array<i32>} : memref<8x1xf32, #tpu.memory_space<vmem>>, vector<8x1xf32>,
    return
  }
}

</mosaic_0001>

<llo_original>
// kernel: tpu_custom_call.1
$region0: #{tpu_custom_call.1}
  #allocation0 [shape = 'u32[]', space=smem, size = 0x4, offset = 0x4, fixed_abs, tag = 'smem constant byte address 0x4 - core index']
  #allocation1 [shape = 'u32[144,128]{1,0:T(1,128)}', space=vmem, size = 0x12000, scoped, tag = 'internal scratch']
  %s0 = inlined_call_operand.hbm [shape: f32[8,96], index: 0, kind: input, shape index: {}]
  %s1 = inlined_call_operand.hbm [shape: f32[110,128], index: 1, kind: input, shape index: {}]
  %s2 = inlined_call_operand.vmem [shape: f32[8,1], index: 2, kind: output, shape index: {}]
  %s3 = sld [smem:[#allocation0]]
  $region26: #{tpu_custom_call.1} parent=0
    _
  %s5 = ssub.s32 1, %s3
  %s6 = scalar_select 0, %s5, %s3
  $region1: #{tpu_custom_call.1} parent=0
    #allocation2 [shape = 'u8[4096]{0}', space=vmem, size = 0x1000, scoped, tag = 'input window, operand 0, single buffered']
    #allocation3 [shape = 's32[1]{0}', space=sflag, size = 0x4, scoped, tag = 'scoped memory for tpu_custom_call.1']
    #allocation4 [shape = 'u8[57344]{0}', space=vmem, size = 0xe000, scoped, tag = 'input window, operand 1, single buffered']
    #allocation5 [shape = 's32[1]{0}', space=sflag, size = 0x4, scoped, tag = 'scoped memory for tpu_custom_call.1']
    %7 = vsyncpa [#allocation3], 0
    %8 = vsyncpa [#allocation5], 0
    // Predicated region
    $region2: #{tpu_custom_call.1} parent=1 // pred_check
      _
    $region3: #{tpu_custom_call.1} parent=1 // pred_check_branch
      %10 = sbr.rel (0) target = $region5
    $region4: #{tpu_custom_call.1} parent=1 // pred_region
      %s12 = ssub.s32 128, 128
      %13 = vsyncadd [#allocation3], %s12
      %s15 = sshll.u32 [#allocation2], 4
      %s16 = int_to_ptr.vmem [resolvable:$true] %s15
      %18 = dma.hbm_to_vmem [thread:$0]  %s0, 128, %s16, [#allocation3]
    $region5: #{tpu_custom_call.1} parent=1 // pred_fallthru
      _
    // Predicated region
    $region6: #{tpu_custom_call.1} parent=1 // pred_check
      _
    $region7: #{tpu_custom_call.1} parent=1 // pred_check_branch
      %20 = sbr.rel (0) target = $region9
    $region8: #{tpu_custom_call.1} parent=1 // pred_region
      %s22 = ssub.s32 1792, 1792
      %23 = vsyncadd [#allocation5], %s22
      %s24 = sshll.u32 [#allocation4], 4
      %s25 = int_to_ptr.vmem [resolvable:$true] %s24
      %30 = dma.hbm_to_vmem [thread:$0]  %s1, 1792, %s25, [#allocation5], 128, 128, 8
    $region9: #{tpu_custom_call.1} parent=1 // pred_fallthru
      _
    // Predicated region
    $region10: #{tpu_custom_call.1} parent=1 // pred_check
      _
    $region11: #{tpu_custom_call.1} parent=1 // pred_check_branch
      %32 = sbr.rel (0) target = $region13
    $region12: #{tpu_custom_call.1} parent=1 // pred_region
      %33 = dma.done [#allocation3], 128
    $region13: #{tpu_custom_call.1} parent=1 // pred_fallthru
      _
    // Predicated region
    $region14: #{tpu_custom_call.1} parent=1 // pred_check
      _
    $region15: #{tpu_custom_call.1} parent=1 // pred_check_branch
      %35 = sbr.rel (0) target = $region17
    $region16: #{tpu_custom_call.1} parent=1 // pred_region
      %36 = dma.done [#allocation5], 1792
    $region17: #{tpu_custom_call.1} parent=1 // pred_fallthru
      _
    %v37 = vld [vmem:[#allocation4] sm:$0xff]
    %v38 = vld [vmem:[#allocation4 + $0x8] sm:$0xff]
    %v39 = vld [vmem:[#allocation4 + $0x10] sm:$0xff]
    %v40 = vld [vmem:[#allocation4 + $0x18] sm:$0xff]
    %v41 = vld [vmem:[#allocation4 + $0x20] sm:$0xff]
    %v42 = vld [vmem:[#allocation4 + $0x28] sm:$0xff]
    %v43 = vld [vmem:[#allocation4 + $0x30] sm:$0xff]
    %v44 = vld [vmem:[#allocation4 + $0x38] sm:$0xff]
    %v45 = vld [vmem:[#allocation4 + $0x40] sm:$0xff]
    %v46 = vld [vmem:[#allocation4 + $0x48] sm:$0xff]
    %v47 = vld [vmem:[#allocation4 + $0x50] sm:$0xff]
    %v48 = vld [vmem:[#allocation4 + $0x58] sm:$0xff]
    %v49 = vld [vmem:[#allocation4 + $0x60] sm:$0x1]
    %v50 = vld [vmem:[#allocation4 + $0x61] sm:$0xf]
    %v51 = vld [vmem:[#allocation4 + $0x65] sm:$0xff]
    %v52 = vld [vmem:[#allocation4 + $0x6d] sm:$0x1]
    %v53 = vld [vmem:[#allocation2] sm:$0xff]
    %v54 = vlaneseq
    %v55 = vshrl.u32 %v54, 7
    %v56 = vsub.s32 0, %v55
    %v57 = vrot.slane %v49, %v56
    %vm58 = vcmask 785408
    %v60 = vsel %vm58, %v53, 0
    %62 = vmatprep.subr.mxu0 0.0
    %63 = vmatpush1.msra.mxu0 0.0
    %64 = vmatprep.subr.mxu0 0.0
    %65 = vmatpush1.msra.mxu0 0.0
    %66 = vmatprep.subr.mxu0 0.0
    %67 = vmatpush1.msra.mxu0 0.0
    %68 = vmatprep.subr.mxu0 0.0
    %69 = vmatpush1.msra.mxu0 0.0
    %70 = vmatprep.subr.mxu0 0.0
    %71 = vmatpush1.msra.mxu0 %v48
    %72 = vmatprep.subr.mxu0 0.0
    %73 = vmatpush1.msra.mxu0 %v47
    %74 = vmatprep.subr.mxu0 0.0
    %75 = vmatpush1.msra.mxu0 %v46
    %76 = vmatprep.subr.mxu0 0.0
    %77 = vmatpush1.msra.mxu0 %v45
    %78 = vmatprep.subr.mxu0 0.0
    %79 = vmatpush1.msra.mxu0 %v44
    %80 = vmatprep.subr.mxu0 0.0
    %81 = vmatpush1.msra.mxu0 %v43
    %82 = vmatprep.subr.mxu0 0.0
    %83 = vmatpush1.msra.mxu0 %v42
    %84 = vmatprep.subr.mxu0 0.0
    %85 = vmatpush1.msra.mxu0 %v41
    %86 = vmatprep.subr.mxu0 0.0
    %87 = vmatpush1.msra.mxu0 %v40
    %88 = vmatprep.subr.mxu0 0.0
    %89 = vmatpush1.msra.mxu0 %v39
    %90 = vmatprep.subr.mxu0 0.0
    %91 = vmatpush1.msra.mxu0 %v38
    %92 = vmatprep.subr.mxu0 0.0
    %93 = vmatpush1.msra.mxu0 %v37
    %94 = vmatprep.subr.mxu0 0.0
    %95 = vmatpush2.msra.mxu0 0.0
    %96 = vmatprep.subr.mxu0 0.0
    %97 = vmatpush2.msra.mxu0 0.0
    %98 = vmatprep.subr.mxu0 0.0
    %99 = vmatpush2.msra.mxu0 0.0
    %100 = vmatprep.subr.mxu0 0.0
    %101 = vmatpush2.msra.mxu0 0.0
    %102 = vmatprep.subr.mxu0 0.0
    %103 = vmatpush2.msra.mxu0 0.0
    %104 = vmatprep.subr.mxu0 0.0
    %105 = vmatpush2.msra.mxu0 0.0
    %106 = vmatprep.subr.mxu0 0.0
    %107 = vmatpush2.msra.mxu0 0.0
    %108 = vmatprep.subr.mxu0 0.0
    %109 = vmatpush2.msra.mxu0 0.0
    %110 = vmatprep.subr.mxu0 0.0
    %111 = vmatpush2.msra.mxu0 0.0
    %112 = vmatprep.subr.mxu0 0.0
    %113 = vmatpush2.msra.mxu0 0.0
    %114 = vmatprep.subr.mxu0 0.0
    %115 = vmatpush2.msra.mxu0 0.0
    %116 = vmatprep.subr.mxu0 0.0
    %117 = vmatpush2.msra.mxu0 0.0
    %118 = vmatprep.subr.mxu0 0.0
    %119 = vmatpush2.msra.mxu0 0.0
    %120 = vmatprep.subr.mxu0 0.0
    %121 = vmatpush2.msra.mxu0 0.0
    %122 = vmatprep.subr.mxu0 0.0
    %123 = vmatpush2.msra.mxu0 0.0
    %124 = vmatprep.subr.mxu0 0.0
    %125 = vmatpush2.msra.mxu0 0.0
    %126 = vmatprep.mubr.f32.mxu0 0.0
    %127 = vmatmul.mubr.f32.gmra.mxu0 %v60
    %v128 = vpop.f32.mrf.mxu0
    %v129 = vadd.f32 %v57, %v128
    %v130 = vpop.f32.mrf.mxu0
    %131 = vdwg.mxu0
    %v132 = vlaneseq
    %v133 = vshrl.u32 %v132, 7
    %v134 = vsub.s32 0, %v133
    %v135 = vrot.slane %v50, %v134
    %v136 = vlaneseq
    %v137 = vshrl.u32 %v136, 7
    %v138 = vsub.s32 1, %v137
    %v139 = vrot.slane %v50, %v138
    %v140 = vlaneseq
    %v141 = vshrl.u32 %v140, 7
    %v142 = vsub.s32 2, %v141
    %v143 = vrot.slane %v50, %v142
    %v144 = vlaneseq
    %v145 = vshrl.u32 %v144, 7
    %v146 = vsub.s32 3, %v145
    %v147 = vrot.slane %v50, %v146
    %v148 = vlaneseq
    %v149 = vshrl.u32 %v148, 7
    %v150 = vsub.s32 0, %v149
    %v151 = vrot.slane %v51, %v150
    %v152 = vlaneseq
    %v153 = vshrl.u32 %v152, 7
    %v154 = vsub.s32 1, %v153
    %v155 = vrot.slane %v51, %v154
    %v156 = vlaneseq
    %v157 = vshrl.u32 %v156, 7
    %v158 = vsub.s32 2, %v157
    %v159 = vrot.slane %v51, %v158
    %v160 = vlaneseq
    %v161 = vshrl.u32 %v160, 7
    %v162 = vsub.s32 3, %v161
    %v163 = vrot.slane %v51, %v162
    %v164 = vlaneseq
    %v165 = vshrl.u32 %v164, 7
    %v166 = vsub.s32 4, %v165
    %v167 = vrot.slane %v51, %v166
    %v168 = vlaneseq
    %v169 = vshrl.u32 %v168, 7
    %v170 = vsub.s32 5, %v169
    %v171 = vrot.slane %v51, %v170
    %v172 = vlaneseq
    %v173 = vshrl.u32 %v172, 7
    %v174 = vsub.s32 6, %v173
    %v175 = vrot.slane %v51, %v174
    %v176 = vlaneseq
    %v177 = vshrl.u32 %v176, 7
    %v178 = vsub.s32 7, %v177
    %v179 = vrot.slane %v51, %v178
    %v180 = vmul.f32 %v135, 0.0
    %v181 = vmul.f32 %v139, 0.0
    %v182 = vadd.f32 %v180, %v181
    %v183 = vmul.f32 %v143, 0.0
    %v184 = vadd.f32 %v182, %v183
    %v185 = vmul.f32 %v147, 0.0
    %v186 = vadd.f32 %v184, %v185
    %v187 = vadd.f32 %v129, %v186
    %v188 = vxor.u32 %v187, 2147483648
    %v189 = vmul.f32 %v188, 1.442695
    %v190 = vpow.pop %v189
    %v191 = vadd.f32 %v190, 1.0
    %v192 = vrcp.pop %v191
    %v193 = vmul.f32 1.0, %v192
    %v194 = vmul.f32 %v193, 2.0
    %v195 = vsub.f32 %v194, 1.0
    %v196 = vmul.f32 %v193, 0.0
    %198 = vrot.lane.b32.xlu0 %v195, 120
    %v199 = vpop.permute.xlu0 %198
    %v201 = vmul.f32 %v193, %v199
    %203 = vrot.lane.b32.xlu0 %v201, 4
    %v204 = vpop.permute.xlu0 %203
    %v206 = vadd.f32 %v196, %v204
    %v207 = vtanh.pop %v206
    %209 = vrot.lane.b32.xlu0 %v207, 8
    %v210 = vpop.permute.xlu0 %209
    %v212 = vmul.f32 %v193, %v210
    %214 = vrot.lane.b32.xlu0 %v151, 12
    %v215 = vpop.permute.xlu0 %214
    %v217 = vmul.f32 %v212, %v215
    %v218 = vadd.f32 %v217, 0.0
    %220 = vset.pattern.permute.xlu0 12
    %221 = vperm.xlu0 %220, %v212
    %v222 = vpop.permute.xlu0 %221
    %v224 = vmul.f32 %v222, %v135
    %225 = vset.pattern.permute.xlu0 13
    %226 = vperm.xlu0 %225, %v212
    %v227 = vpop.permute.xlu0 %226
    %v229 = vmul.f32 %v227, %v139
    %v230 = vadd.f32 %v224, %v229
    %231 = vset.pattern.permute.xlu0 14
    %232 = vperm.xlu0 %231, %v212
    %v233 = vpop.permute.xlu0 %232
    %v235 = vmul.f32 %v233, %v143
    %v236 = vadd.f32 %v230, %v235
    %237 = vset.pattern.permute.xlu0 15
    %238 = vperm.xlu0 %237, %v212
    %v239 = vpop.permute.xlu0 %238
    %v241 = vmul.f32 %v239, %v147
    %v242 = vadd.f32 %v236, %v241
    %244 = vrot.lane.b32.xlu0 %v242, 16
    %v245 = vpop.permute.xlu0 %244
    %v247 = vadd.f32 %v129, %v245
    %v248 = vxor.u32 %v247, 2147483648
    %v249 = vmul.f32 %v248, 1.442695
    %v250 = vpow.pop %v249
    %v251 = vadd.f32 %v250, 1.0
    %v252 = vrcp.pop %v251
    %v253 = vmul.f32 1.0, %v252
    %v254 = vmul.f32 %v253, 2.0
    %v255 = vsub.f32 %v254, 1.0
    %257 = vrot.lane.b32.xlu0 %v206, 16
    %v258 = vpop.permute.xlu0 %257
    %v260 = vmul.f32 %v253, %v258
    %262 = vrot.lane.b32.xlu0 %v255, 120
    %v263 = vpop.permute.xlu0 %262
    %v265 = vmul.f32 %v253, %v263
    %267 = vrot.lane.b32.xlu0 %v265, 4
    %v268 = vpop.permute.xlu0 %267
    %v270 = vadd.f32 %v260, %v268
    %v271 = vtanh.pop %v270
    %273 = vrot.lane.b32.xlu0 %v271, 8
    %v274 = vpop.permute.xlu0 %273
    %v276 = vmul.f32 %v253, %v274
    %278 = vrot.lane.b32.xlu0 %v155, 28
    %v279 = vpop.permute.xlu0 %278
    %v281 = vmul.f32 %v276, %v279
    %283 = vrot.lane.b32.xlu0 %v281, 112
    %v284 = vpop.permute.xlu0 %283
    %v286 = vadd.f32 %v218, %v284
    %288 = vset.pattern.permute.xlu0 28
    %289 = vperm.xlu0 %288, %v276
    %v290 = vpop.permute.xlu0 %289
    %v292 = vmul.f32 %v290, %v135
    %293 = vset.pattern.permute.xlu0 29
    %294 = vperm.xlu0 %293, %v276
    %v295 = vpop.permute.xlu0 %294
    %v297 = vmul.f32 %v295, %v139
    %v298 = vadd.f32 %v292, %v297
    %299 = vset.pattern.permute.xlu0 30
    %300 = vperm.xlu0 %299, %v276
    %v301 = vpop.permute.xlu0 %300
    %v303 = vmul.f32 %v301, %v143
    %v304 = vadd.f32 %v298, %v303
    %305 = vset.pattern.permute.xlu0 31
    %306 = vperm.xlu0 %305, %v276
    %v307 = vpop.permute.xlu0 %306
    %v309 = vmul.f32 %v307, %v147
    %v310 = vadd.f32 %v304, %v309
    %312 = vrot.lane.b32.xlu0 %v310, 32
    %v313 = vpop.permute.xlu0 %312
    %v315 = vadd.f32 %v129, %v313
    %v316 = vxor.u32 %v315, 2147483648
    %v317 = vmul.f32 %v316, 1.442695
    %v318 = vpow.pop %v317
    %v319 = vadd.f32 %v318, 1.0
    %v320 = vrcp.pop %v319
    %v321 = vmul.f32 1.0, %v320
    %v322 = vmul.f32 %v321, 2.0
    %v323 = vsub.f32 %v322, 1.0
    %325 = vrot.lane.b32.xlu0 %v270, 16
    %v326 = vpop.permute.xlu0 %325
    %v328 = vmul.f32 %v321, %v326
    %330 = vrot.lane.b32.xlu0 %v323, 120
    %v331 = vpop.permute.xlu0 %330
    %v333 = vmul.f32 %v321, %v331
    %335 = vrot.lane.b32.xlu0 %v333, 4
    %v336 = vpop.permute.xlu0 %335
    %v338 = vadd.f32 %v328, %v336
    %v339 = vtanh.pop %v338
    %341 = vrot.lane.b32.xlu0 %v339, 8
    %v342 = vpop.permute.xlu0 %341
    %v344 = vmul.f32 %v321, %v342
    %346 = vrot.lane.b32.xlu0 %v159, 44
    %v347 = vpop.permute.xlu0 %346
    %v349 = vmul.f32 %v344, %v347
    %351 = vrot.lane.b32.xlu0 %v349, 96
    %v352 = vpop.permute.xlu0 %351
    %v354 = vadd.f32 %v286, %v352
    %356 = vset.pattern.permute.xlu0 44
    %357 = vperm.xlu0 %356, %v344
    %v358 = vpop.permute.xlu0 %357
    %v360 = vmul.f32 %v358, %v135
    %361 = vset.pattern.permute.xlu0 45
    %362 = vperm.xlu0 %361, %v344
    %v363 = vpop.permute.xlu0 %362
    %v365 = vmul.f32 %v363, %v139
    %v366 = vadd.f32 %v360, %v365
    %367 = vset.pattern.permute.xlu0 46
    %368 = vperm.xlu0 %367, %v344
    %v369 = vpop.permute.xlu0 %368
    %v371 = vmul.f32 %v369, %v143
    %v372 = vadd.f32 %v366, %v371
    %373 = vset.pattern.permute.xlu0 47
    %374 = vperm.xlu0 %373, %v344
    %v375 = vpop.permute.xlu0 %374
    %v377 = vmul.f32 %v375, %v147
    %v378 = vadd.f32 %v372, %v377
    %380 = vrot.lane.b32.xlu0 %v378, 48
    %v381 = vpop.permute.xlu0 %380
    %v383 = vadd.f32 %v129, %v381
    %v384 = vxor.u32 %v383, 2147483648
    %v385 = vmul.f32 %v384, 1.442695
    %v386 = vpow.pop %v385
    %v387 = vadd.f32 %v386, 1.0
    %v388 = vrcp.pop %v387
    %v389 = vmul.f32 1.0, %v388
    %v390 = vmul.f32 %v389, 2.0
    %v391 = vsub.f32 %v390, 1.0
    %393 = vrot.lane.b32.xlu0 %v338, 16
    %v394 = vpop.permute.xlu0 %393
    %v396 = vmul.f32 %v389, %v394
    %398 = vrot.lane.b32.xlu0 %v391, 120
    %v399 = vpop.permute.xlu0 %398
    %v401 = vmul.f32 %v389, %v399
    %403 = vrot.lane.b32.xlu0 %v401, 4
    %v404 = vpop.permute.xlu0 %403
    %v406 = vadd.f32 %v396, %v404
    %v407 = vtanh.pop %v406
    %409 = vrot.lane.b32.xlu0 %v407, 8
    %v410 = vpop.permute.xlu0 %409
    %v412 = vmul.f32 %v389, %v410
    %414 = vrot.lane.b32.xlu0 %v163, 60
    %v415 = vpop.permute.xlu0 %414
    %v417 = vmul.f32 %v412, %v415
    %419 = vrot.lane.b32.xlu0 %v417, 80
    %v420 = vpop.permute.xlu0 %419
    %v422 = vadd.f32 %v354, %v420
    %424 = vset.pattern.permute.xlu0 60
    %425 = vperm.xlu0 %424, %v412
    %v426 = vpop.permute.xlu0 %425
    %v428 = vmul.f32 %v426, %v135
    %429 = vset.pattern.permute.xlu0 61
    %430 = vperm.xlu0 %429, %v412
    %v431 = vpop.permute.xlu0 %430
    %v433 = vmul.f32 %v431, %v139
    %v434 = vadd.f32 %v428, %v433
    %435 = vset.pattern.permute.xlu0 62
    %436 = vperm.xlu0 %435, %v412
    %v437 = vpop.permute.xlu0 %436
    %v439 = vmul.f32 %v437, %v143
    %v440 = vadd.f32 %v434, %v439
    %441 = vset.pattern.permute.xlu0 63
    %442 = vperm.xlu0 %441, %v412
    %v443 = vpop.permute.xlu0 %442
    %v445 = vmul.f32 %v443, %v147
    %v446 = vadd.f32 %v440, %v445
    %448 = vrot.lane.b32.xlu0 %v446, 64
    %v449 = vpop.permute.xlu0 %448
    %v451 = vadd.f32 %v129, %v449
    %v452 = vxor.u32 %v451, 2147483648
    %v453 = vmul.f32 %v452, 1.442695
    %v454 = vpow.pop %v453
    %v455 = vadd.f32 %v454, 1.0
    %v456 = vrcp.pop %v455
    %v457 = vmul.f32 1.0, %v456
    %v458 = vmul.f32 %v457, 2.0
    %v459 = vsub.f32 %v458, 1.0
    %461 = vrot.lane.b32.xlu0 %v406, 16
    %v462 = vpop.permute.xlu0 %461
    %v464 = vmul.f32 %v457, %v462
    %466 = vrot.lane.b32.xlu0 %v459, 120
    %v467 = vpop.permute.xlu0 %466
    %v469 = vmul.f32 %v457, %v467
    %471 = vrot.lane.b32.xlu0 %v469, 4
    %v472 = vpop.permute.xlu0 %471
    %v474 = vadd.f32 %v464, %v472
    %v475 = vtanh.pop %v474
    %477 = vrot.lane.b32.xlu0 %v475, 8
    %v478 = vpop.permute.xlu0 %477
    %v480 = vmul.f32 %v457, %v478
    %482 = vrot.lane.b32.xlu0 %v167, 76
    %v483 = vpop.permute.xlu0 %482
    %v485 = vmul.f32 %v480, %v483
    %487 = vrot.lane.b32.xlu0 %v485, 64
    %v488 = vpop.permute.xlu0 %487
    %v490 = vadd.f32 %v422, %v488
    %492 = vset.pattern.permute.xlu0 76
    %493 = vperm.xlu0 %492, %v480
    %v494 = vpop.permute.xlu0 %493
    %v496 = vmul.f32 %v494, %v135
    %497 = vset.pattern.permute.xlu0 77
    %498 = vperm.xlu0 %497, %v480
    %v499 = vpop.permute.xlu0 %498
    %v501 = vmul.f32 %v499, %v139
    %v502 = vadd.f32 %v496, %v501
    %503 = vset.pattern.permute.xlu0 78
    %504 = vperm.xlu0 %503, %v480
    %v505 = vpop.permute.xlu0 %504
    %v507 = vmul.f32 %v505, %v143
    %v508 = vadd.f32 %v502, %v507
    %509 = vset.pattern.permute.xlu0 79
    %510 = vperm.xlu0 %509, %v480
    %v511 = vpop.permute.xlu0 %510
    %v513 = vmul.f32 %v511, %v147
    %v514 = vadd.f32 %v508, %v513
    %516 = vrot.lane.b32.xlu0 %v514, 80
    %v517 = vpop.permute.xlu0 %516
    %v519 = vadd.f32 %v129, %v517
    %v520 = vxor.u32 %v519, 2147483648
    %v521 = vmul.f32 %v520, 1.442695
    %v522 = vpow.pop %v521
    %v523 = vadd.f32 %v522, 1.0
    %v524 = vrcp.pop %v523
    %v525 = vmul.f32 1.0, %v524
    %v526 = vmul.f32 %v525, 2.0
    %v527 = vsub.f32 %v526, 1.0
    %529 = vrot.lane.b32.xlu0 %v474, 16
    %v530 = vpop.permute.xlu0 %529
    %v532 = vmul.f32 %v525, %v530
    %534 = vrot.lane.b32.xlu0 %v527, 120
    %v535 = vpop.permute.xlu0 %534
    %v537 = vmul.f32 %v525, %v535
    %539 = vrot.lane.b32.xlu0 %v537, 4
    %v540 = vpop.permute.xlu0 %539
    %v542 = vadd.f32 %v532, %v540
    %v543 = vtanh.pop %v542
    %545 = vrot.lane.b32.xlu0 %v543, 8
    %v546 = vpop.permute.xlu0 %545
    %v548 = vmul.f32 %v525, %v546
    %550 = vrot.lane.b32.xlu0 %v171, 92
    %v551 = vpop.permute.xlu0 %550
    %v553 = vmul.f32 %v548, %v551
    %555 = vrot.lane.b32.xlu0 %v553, 48
    %v556 = vpop.permute.xlu0 %555
    %v558 = vadd.f32 %v490, %v556
    %560 = vset.pattern.permute.xlu0 92
    %561 = vperm.xlu0 %560, %v548
    %v562 = vpop.permute.xlu0 %561
    %v564 = vmul.f32 %v562, %v135
    %565 = vset.pattern.permute.xlu0 93
    %566 = vperm.xlu0 %565, %v548
    %v567 = vpop.permute.xlu0 %566
    %v569 = vmul.f32 %v567, %v139
    %v570 = vadd.f32 %v564, %v569
    %571 = vset.pattern.permute.xlu0 94
    %572 = vperm.xlu0 %571, %v548
    %v573 = vpop.permute.xlu0 %572
    %v575 = vmul.f32 %v573, %v143
    %v576 = vadd.f32 %v570, %v575
    %577 = vset.pattern.permute.xlu0 95
    %578 = vperm.xlu0 %577, %v548
    %v579 = vpop.permute.xlu0 %578
    %v581 = vmul.f32 %v579, %v147
    %v582 = vadd.f32 %v576, %v581
    %584 = vrot.lane.b32.xlu0 %v582, 96
    %v585 = vpop.permute.xlu0 %584
    %v587 = vadd.f32 %v129, %v585
    %v588 = vxor.u32 %v587, 2147483648
    %v589 = vmul.f32 %v588, 1.442695
    %v590 = vpow.pop %v589
    %v591 = vadd.f32 %v590, 1.0
    %v592 = vrcp.pop %v591
    %v593 = vmul.f32 1.0, %v592
    %v594 = vmul.f32 %v593, 2.0
    %v595 = vsub.f32 %v594, 1.0
    %597 = vrot.lane.b32.xlu0 %v542, 16
    %v598 = vpop.permute.xlu0 %597
    %v600 = vmul.f32 %v593, %v598
    %602 = vrot.lane.b32.xlu0 %v595, 120
    %v603 = vpop.permute.xlu0 %602
    %v605 = vmul.f32 %v593, %v603
    %607 = vrot.lane.b32.xlu0 %v605, 4
    %v608 = vpop.permute.xlu0 %607
    %v610 = vadd.f32 %v600, %v608
    %v611 = vtanh.pop %v610
    %613 = vrot.lane.b32.xlu0 %v611, 8
    %v614 = vpop.permute.xlu0 %613
    %v616 = vmul.f32 %v593, %v614
    %618 = vrot.lane.b32.xlu0 %v175, 108
    %v619 = vpop.permute.xlu0 %618
    %v621 = vmul.f32 %v616, %v619
    %623 = vrot.lane.b32.xlu0 %v621, 32
    %v624 = vpop.permute.xlu0 %623
    %v626 = vadd.f32 %v558, %v624
    %628 = vset.pattern.permute.xlu0 108
    %629 = vperm.xlu0 %628, %v616
    %v630 = vpop.permute.xlu0 %629
    %v632 = vmul.f32 %v630, %v135
    %633 = vset.pattern.permute.xlu0 109
    %634 = vperm.xlu0 %633, %v616
    %v635 = vpop.permute.xlu0 %634
    %v637 = vmul.f32 %v635, %v139
    %v638 = vadd.f32 %v632, %v637
    %639 = vset.pattern.permute.xlu0 110
    %640 = vperm.xlu0 %639, %v616
    %v641 = vpop.permute.xlu0 %640
    %v643 = vmul.f32 %v641, %v143
    %v644 = vadd.f32 %v638, %v643
    %645 = vset.pattern.permute.xlu0 111
    %646 = vperm.xlu0 %645, %v616
    %v647 = vpop.permute.xlu0 %646
    %v649 = vmul.f32 %v647, %v147
    %v650 = vadd.f32 %v644, %v649
    %652 = vrot.lane.b32.xlu0 %v650, 112
    %v653 = vpop.permute.xlu0 %652
    %v655 = vadd.f32 %v129, %v653
    %v656 = vxor.u32 %v655, 2147483648
    %v657 = vmul.f32 %v656, 1.442695
    %v658 = vpow.pop %v657
    %v659 = vadd.f32 %v658, 1.0
    %v660 = vrcp.pop %v659
    %v661 = vmul.f32 1.0, %v660
    %v662 = vmul.f32 %v661, 2.0
    %v663 = vsub.f32 %v662, 1.0
    %665 = vrot.lane.b32.xlu0 %v610, 16
    %v666 = vpop.permute.xlu0 %665
    %v668 = vmul.f32 %v661, %v666
    %670 = vrot.lane.b32.xlu0 %v663, 120
    %v671 = vpop.permute.xlu0 %670
    %v673 = vmul.f32 %v661, %v671
    %675 = vrot.lane.b32.xlu0 %v673, 4
    %v676 = vpop.permute.xlu0 %675
    %v678 = vadd.f32 %v668, %v676
    %v679 = vtanh.pop %v678
    %681 = vrot.lane.b32.xlu0 %v679, 8
    %v682 = vpop.permute.xlu0 %681
    %v684 = vmul.f32 %v661, %v682
    %686 = vrot.lane.b32.xlu0 %v179, 124
    %v687 = vpop.permute.xlu0 %686
    %v689 = vmul.f32 %v684, %v687
    %691 = vrot.lane.b32.xlu0 %v689, 16
    %v692 = vpop.permute.xlu0 %691
    %v694 = vadd.f32 %v626, %v692
    %696 = vrot.lane.b32.xlu0 %v694, 116
    %v697 = vpop.permute.xlu0 %696
    %vm699 = vcmask 31744
    %v700 = vsel %vm699, %v697, 0.0
    %701 = vadd.xlane.f32.xlu0 %v700
    %v702 = vpop.xlane.xlu0 %701
    %v703 = vlaneseq
    %v704 = vshrl.u32 %v703, 7
    %v705 = vsub.s32 0, %v704
    %v706 = vrot.slane %v52, %v705
    %v707 = vadd.f32 %v702, %v706
    %vm708 = vcmask 7168
    %709 = vst.msk [vmem:[%s2] sm:$0xff] %vm708, %v707
    // Predicated region
    $region18: #{tpu_custom_call.1} parent=1 // pred_check
      _
    $region19: #{tpu_custom_call.1} parent=1 // pred_check_branch
      %711 = sbr.rel (0) target = $region21
    $region20: #{tpu_custom_call.1} parent=1 // pred_region
      _
    $region21: #{tpu_custom_call.1} parent=1 // pred_fallthru
      _
    // Predicated region
    $region22: #{tpu_custom_call.1} parent=1 // pred_check
      _
    $region23: #{tpu_custom_call.1} parent=1 // pred_check_branch
      %713 = sbr.rel (0) target = $region25
    $region24: #{tpu_custom_call.1} parent=1 // pred_region
      _
    $region25: #{tpu_custom_call.1} parent=1 // pred_fallthru
      _
    %714 = vsyncpa [#allocation3], 1
    %715 = vsyncpa [#allocation5], 1

</llo_original>
